<compile_context>
chip_gen: v7x
topology: tpu7x:2x2x1
jax: 0.10.0
libtpu: 0.0.40
codegen_flags: <defaults>
</compile_context>

<pallas_src>
import jax
import jax.numpy as jnp
from jax.experimental import pallas as pl
from jax.experimental.pallas import tpu as pltpu

_MAX_TB = 1024     # batch-tile cap (rows)
_MIN_TILES = 4     # v7x: 2 TensorCores x >=2 tiles each for double-buffering


def _round_up(x, m):
    return ((x + m - 1) // m) * m


def _sublane(dtype):
    """Sublane packing of the batch (second-to-last) dim for this dtype."""
    return {4: 8, 2: 16, 1: 32}.get(jnp.dtype(dtype).itemsize, 8)


def _mlp_decoder_kernel(z_ref, w1_ref, b1_ref, w2_ref, b2_ref, o_ref):
    # fc1: [TB, L] @ [L, H] + [1, H]   (f32 accumulation on the MXU)
    h = jnp.dot(z_ref[...], w1_ref[...], preferred_element_type=jnp.float32)
    h = jnp.maximum(h + b1_ref[...].astype(jnp.float32), 0.0)
    # fc2: [TB, H] @ [H, O] + [1, O]
    # (cast of h to the weight dtype is a no-op for f32 weights; for bf16
    #  weights it is the standard mixed-precision choice.)
    out = jnp.dot(h.astype(w2_ref.dtype), w2_ref[...],
                  preferred_element_type=jnp.float32)
    out = out + b2_ref[...].astype(jnp.float32)
    o_ref[...] = out.astype(o_ref.dtype)


def _batch_tiling(batch, sublane):
    """Pick (block_batch, padded_batch).

    Single tile (block == full batch, no padding / no divisibility constraint)
    for small batches; otherwise >=_MIN_TILES tiles (so v7x's two TensorCores
    each get >=2 grid steps) capped at _MAX_TB rows per tile, with block_batch
    a sublane multiple and the batch rounded up to a whole number of tiles.
    """
    n_tiles = max(-(-batch // _MAX_TB), 1)
    if batch >= _MIN_TILES * 4 * sublane:
        n_tiles = max(n_tiles, _MIN_TILES)
    if n_tiles == 1:
        return batch, batch
    tb = _round_up(-(-batch // n_tiles), sublane)
    return tb, _round_up(batch, tb)


def mlp_decoder_forward(z, w1, b1, w2, b2):
    """Fused fc1 -> ReLU -> fc2 (PyTorch MLPDecoder.forward).

    Args:
        z : [batch, latent_dim]
        w1: [latent_dim, hidden_dim]   (y = x @ w1 + b1, transpose of nn.Linear.weight)
        b1: [hidden_dim]
        w2: [hidden_dim, obs_dim]
        b2: [obs_dim]
    Returns:
        [batch, obs_dim]
    """
    batch, latent_dim = z.shape
    hidden_dim = w1.shape[1]
    obs_dim = w2.shape[1]
    dtype = z.dtype
    act_itemsize = jnp.dtype(dtype).itemsize
    w_itemsize = jnp.dtype(w1.dtype).itemsize

    block_batch, batch_p = _batch_tiling(batch, _sublane(dtype))

    # Only the batch dim is ever padded (and only when it is tiled). Padded
    # rows produce garbage (relu(b1) @ w2 + b2) that the final slice removes.
    if batch_p != batch:
        z_in = jnp.zeros((batch_p, latent_dim), dtype).at[:batch].set(z)
    else:
        z_in = z
    b1_2d = b1.reshape(1, hidden_dim)
    b2_2d = b2.reshape(1, obs_dim)

    grid = (batch_p // block_batch,)

    # VMEM footprint of one grid step: double-buffered activation tiles,
    # single-resident weights/biases (constant index_map => pipeline keeps
    # them, but budget 2x to cover its buffering), f32 intermediates.
    vmem_bytes = (
        2 * block_batch * latent_dim * act_itemsize      # z tiles
        + 2 * block_batch * obs_dim * act_itemsize       # out tiles
        + 2 * (latent_dim * hidden_dim + hidden_dim) * w_itemsize
        + 2 * (hidden_dim * obs_dim + obs_dim) * w_itemsize
        + block_batch * hidden_dim * 4                   # f32 hidden
        + block_batch * obs_dim * 4                      # f32 accumulator
    )
    vmem_limit = int(min(max(2 * vmem_bytes, 4 * 1024 * 1024),
                         64 * 1024 * 1024))

    flops = 2 * batch_p * (latent_dim * hidden_dim + hidden_dim * obs_dim)
    bytes_accessed = int(
        act_itemsize * (batch_p * latent_dim + batch_p * obs_dim)
        + w_itemsize * (latent_dim * hidden_dim + hidden_dim
                        + hidden_dim * obs_dim + obs_dim))

    # TODO(synk): if hidden_dim/obs_dim ever grow so large that the weights
    # alone exceed VMEM, add a grid axis over obs_dim (256-wide N tiles on
    # v6e/v7x, 128 on v5e) with K chunking over hidden_dim.
    out_p = pl.pallas_call(
        _mlp_decoder_kernel,
        out_shape=jax.ShapeDtypeStruct((batch_p, obs_dim), dtype),
        grid_spec=pltpu.PrefetchScalarGridSpec(
            num_scalar_prefetch=0,
            grid=grid,
            in_specs=[
                # Activations: one batch tile per grid step; feature dim is
                # the full array extent (no padding, no masked extra traffic).
                pl.BlockSpec((block_batch, latent_dim), lambda i: (i, 0)),
                # Weights / biases: constant block -> VMEM-resident, no re-DMA.
                pl.BlockSpec((latent_dim, hidden_dim), lambda i: (0, 0)),
                pl.BlockSpec((1, hidden_dim), lambda i: (0, 0)),
                pl.BlockSpec((hidden_dim, obs_dim), lambda i: (0, 0)),
                pl.BlockSpec((1, obs_dim), lambda i: (0, 0)),
            ],
            out_specs=pl.BlockSpec((block_batch, obs_dim), lambda i: (i, 0)),
        ),
        compiler_params=pltpu.CompilerParams(
            dimension_semantics=("parallel",),   # megacore: shard batch tiles
            vmem_limit_bytes=vmem_limit,
        ),
        cost_estimate=pl.CostEstimate(
            flops=flops, transcendentals=0, bytes_accessed=bytes_accessed),
    )(z_in, w1, b1_2d, w2, b2_2d)

    if batch_p != batch:
        out_p = out_p[:batch]
    return out_p


def init_params(key, latent_dim, hidden_dim, obs_dim, dtype=jnp.float32):
    """Deterministic init matching nn.Linear's U(-1/sqrt(fan_in), 1/sqrt(fan_in))."""
    k1, k2, k3, k4 = jax.random.split(key, 4)
    bound1 = 1.0 / (latent_dim ** 0.5)
    bound2 = 1.0 / (hidden_dim ** 0.5)
    # Stored as [in, out] (transpose of PyTorch's [out, in]) for x @ W.
    w1 = jax.random.uniform(k1, (latent_dim, hidden_dim), dtype, -bound1, bound1)
    b1 = jax.random.uniform(k2, (hidden_dim,), dtype, -bound1, bound1)
    w2 = jax.random.uniform(k3, (hidden_dim, obs_dim), dtype, -bound2, bound2)
    b2 = jax.random.uniform(k4, (obs_dim,), dtype, -bound2, bound2)
    return w1, b1, w2, b2


if __name__ == "__main__":
    # Shapes consistent with the module: z is [batch, latent_dim],
    # hidden_dim = m['nhidden'], obs_dim = v['input_size'].
    latent_dim, hidden_dim, obs_dim = 8, 32, 16

    key = jax.random.PRNGKey(0)
    kp, kz_small, kz_big = jax.random.split(key, 3)
    w1, b1, w2, b2 = init_params(kp, latent_dim, hidden_dim, obs_dim)

    # Two cases: tiny single-tile batch, and a larger batch that exercises the
    # multi-tile (grid=4, 96-row tiles, zero padding) path.
    for batch, kz in ((4, kz_small), (384, kz_big)):
        z = jax.random.normal(kz, (batch, latent_dim), dtype=jnp.float32)
        out = jax.block_until_ready(mlp_decoder_forward(z, w1, b1, w2, b2))

        # Pure-JAX reference of the PyTorch forward: fc2(relu(fc1(z)))
        ref = jnp.maximum(z @ w1 + b1, 0.0) @ w2 + b2
        assert out.shape == (batch, obs_dim)
        assert jnp.allclose(out, ref, atol=1e-4, rtol=1e-5), (
            f"mismatch at batch={batch}: "
            f"max abs err {float(jnp.max(jnp.abs(out - ref))):.3e}")

    print("KERNEL_OK")
</pallas_src>

<mosaic_0001>
module attributes {stable_mosaic.version = 11 : i64} {
  func.func @_mlp_decoder_kernel(%arg0: i32, %arg1: memref<4x8xf32, #tpu.memory_space<vmem>>, %arg2: memref<8x32xf32, #tpu.memory_space<vmem>>, %arg3: memref<1x32xf32, #tpu.memory_space<vmem>>, %arg4: memref<32x16xf32, #tpu.memory_space<vmem>>, %arg5: memref<1x16xf32, #tpu.memory_space<vmem>>, %arg6: memref<4x16xf32, #tpu.memory_space<vmem>>) attributes {dimension_semantics = [#tpu.dimension_semantics<parallel>], iteration_bounds = array<i64: 1>, scalar_prefetch = 0 : i64, scratch_operands = 0 : i64, tpu.core_type = #tpu.core_type<tc>, window_params = [{transform_indices = @transform_0, window_bounds = array<i64: 4, 8>}, {pipeline_mode = #tpu.pipeline_mode<synchronous>, transform_indices = @transform_1, window_bounds = array<i64: 8, 32>}, {pipeline_mode = #tpu.pipeline_mode<synchronous>, transform_indices = @transform_2, window_bounds = array<i64: 1, 32>}, {pipeline_mode = #tpu.pipeline_mode<synchronous>, transform_indices = @transform_3, window_bounds = array<i64: 32, 16>}, {pipeline_mode = #tpu.pipeline_mode<synchronous>, transform_indices = @transform_4, window_bounds = array<i64: 1, 16>}, {transform_indices = @transform_5, window_bounds = array<i64: 4, 16>}]} {
    %c0 = arith.constant 0 : index
    %c0_0 = arith.constant 0 : index
    %0 = vector.load %arg1[%c0, %c0_0] : memref<4x8xf32, #tpu.memory_space<vmem>>, vector<4x8xf32>
    %c0_1 = arith.constant 0 : index
    %c0_2 = arith.constant 0 : index
    %1 = vector.load %arg2[%c0_1, %c0_2] : memref<8x32xf32, #tpu.memory_space<vmem>>, vector<8x32xf32>
    %cst = arith.constant dense<0.000000e+00> : vector<4x32xf32>
    %2 = tpu.matmul %0, %1, %cst {dimension_numbers = #tpu.dot_dimension_numbers<[1], [0], [0], [1], [0, 0, 1, 1], [], []>} : vector<4x8xf32>, vector<8x32xf32>, vector<4x32xf32> -> vector<4x32xf32>
    %c0_3 = arith.constant 0 : index
    %c0_4 = arith.constant 0 : index
    %3 = vector.load %arg3[%c0_3, %c0_4] : memref<1x32xf32, #tpu.memory_space<vmem>>, vector<1x32xf32>
    %4 = vector.broadcast %3 : vector<1x32xf32> to vector<4x32xf32>
    %5 = arith.addf %2, %4 : vector<4x32xf32>
    %cst_5 = arith.constant 0.000000e+00 : f32
    %6 = vector.broadcast %cst_5 : f32 to vector<4x32xf32>
    %7 = arith.maximumf %5, %6 : vector<4x32xf32>
    %c0_6 = arith.constant 0 : index
    %c0_7 = arith.constant 0 : index
    %8 = vector.load %arg4[%c0_6, %c0_7] : memref<32x16xf32, #tpu.memory_space<vmem>>, vector<32x16xf32>
    %cst_8 = arith.constant dense<0.000000e+00> : vector<4x16xf32>
    %9 = tpu.matmul %7, %8, %cst_8 {dimension_numbers = #tpu.dot_dimension_numbers<[1], [0], [0], [1], [0, 0, 1, 1], [], []>} : vector<4x32xf32>, vector<32x16xf32>, vector<4x16xf32> -> vector<4x16xf32>
    %c0_9 = arith.constant 0 : index
    %c0_10 = arith.constant 0 : index
    %10 = vector.load %arg5[%c0_9, %c0_10] : memref<1x16xf32, #tpu.memory_space<vmem>>, vector<1x16xf32>
    %11 = vector.broadcast %10 : vector<1x16xf32> to vector<4x16xf32>
    %12 = arith.addf %9, %11 : vector<4x16xf32>
    %c0_11 = arith.constant 0 : index
    %c0_12 = arith.constant 0 : index
    %13 = vector.load %arg6[%c0_11, %c0_12] : memref<4x16xf32, #tpu.memory_space<vmem>>, vector<4x16xf32>
    tpu.vector_store %arg6[%c0_11, %c0_12], %12 {strides = array<i32>} : memref<4x16xf32, #tpu.memory_space<vmem>>, vector<4x16xf32>,
    return
  }
  func.func @transform_0(%arg0: i32) -> (i32, i32) {
    %c0_i32 = arith.constant 0 : i32
    %c0_i32_0 = arith.constant 0 : i32
    return %arg0, %c0_i32 : i32, i32
  }
  func.func @transform_1(%arg0: i32) -> (i32, i32) {
    %c0_i32 = arith.constant 0 : i32
    %c0_i32_0 = arith.constant 0 : i32
    %c0_i32_1 = arith.constant 0 : i32
    return %c0_i32, %c0_i32_0 : i32, i32
  }
  func.func @transform_2(%arg0: i32) -> (i32, i32) {
    %c0_i32 = arith.constant 0 : i32
    %c0_i32_0 = arith.constant 0 : i32
    %c0_i32_1 = arith.constant 0 : i32
    return %c0_i32, %c0_i32_0 : i32, i32
  }
  func.func @transform_3(%arg0: i32) -> (i32, i32) {
    %c0_i32 = arith.constant 0 : i32
    %c0_i32_0 = arith.constant 0 : i32
    %c0_i32_1 = arith.constant 0 : i32
    return %c0_i32, %c0_i32_0 : i32, i32
  }
  func.func @transform_4(%arg0: i32) -> (i32, i32) {
    %c0_i32 = arith.constant 0 : i32
    %c0_i32_0 = arith.constant 0 : i32
    %c0_i32_1 = arith.constant 0 : i32
    return %c0_i32, %c0_i32_0 : i32, i32
  }
  func.func @transform_5(%arg0: i32) -> (i32, i32) {
    %c0_i32 = arith.constant 0 : i32
    %c0_i32_0 = arith.constant 0 : i32
    return %arg0, %c0_i32 : i32, i32
  }
}

</mosaic_0001>

<llo_original>
// kernel: tpu_custom_call.1
$region0: #{tpu_custom_call.1}
  #allocation0 [shape = 'u32[]', space=smem, size = 0x4, offset = 0x4, fixed_abs, tag = 'smem constant byte address 0x4 - core index']
  #allocation1 [shape = 'u32[144,128]{1,0:T(1,128)}', space=vmem, size = 0x12000, scoped, tag = 'internal scratch']
  %s0 = inlined_call_operand.vmem [shape: f32[4,8], index: 0, kind: input, shape index: {}]
  %s1 = inlined_call_operand.vmem [shape: f32[8,32], index: 1, kind: input, shape index: {}]
  %s2 = inlined_call_operand.vmem [shape: f32[1,32], index: 2, kind: input, shape index: {}]
  %s3 = inlined_call_operand.vmem [shape: f32[32,16], index: 3, kind: input, shape index: {}]
  %s4 = inlined_call_operand.vmem [shape: f32[1,16], index: 4, kind: input, shape index: {}]
  %s5 = inlined_call_operand.hbm [shape: f32[4,16], index: 5, kind: output, shape index: {}]
  %s6 = sld [smem:[#allocation0]]
  $region30: #{tpu_custom_call.1} parent=0
    _
  %s8 = ssub.s32 1, %s6
  %s9 = scalar_select 0, %s8, %s6
  $region1: #{tpu_custom_call.1} parent=0
    #allocation2 [shape = 'u8[2048]{0}', space=vmem, size = 0x800, scoped, tag = 'output window, operand 0, single buffered']
    #allocation3 [shape = 's32[1]{0}', space=sflag, size = 0x4, scoped, tag = 'scoped memory for tpu_custom_call.1']
    %10 = vsyncpa [#allocation3], 0
    // Predicated region
    $region2: #{tpu_custom_call.1} parent=1 // pred_check
      _
    $region3: #{tpu_custom_call.1} parent=1 // pred_check_branch
      %12 = sbr.rel (0) target = $region5
    $region4: #{tpu_custom_call.1} parent=1 // pred_region
      _
    $region5: #{tpu_custom_call.1} parent=1 // pred_fallthru
      _
    // Predicated region
    $region6: #{tpu_custom_call.1} parent=1 // pred_check
      _
    $region7: #{tpu_custom_call.1} parent=1 // pred_check_branch
      %14 = sbr.rel (0) target = $region9
    $region8: #{tpu_custom_call.1} parent=1 // pred_region
      _
    $region9: #{tpu_custom_call.1} parent=1 // pred_fallthru
      _
    // Predicated region
    $region10: #{tpu_custom_call.1} parent=1 // pred_check
      _
    $region11: #{tpu_custom_call.1} parent=1 // pred_check_branch
      %16 = sbr.rel (0) target = $region13
    $region12: #{tpu_custom_call.1} parent=1 // pred_region
      _
    $region13: #{tpu_custom_call.1} parent=1 // pred_fallthru
      _
    // Predicated region
    $region14: #{tpu_custom_call.1} parent=1 // pred_check
      _
    $region15: #{tpu_custom_call.1} parent=1 // pred_check_branch
      %18 = sbr.rel (0) target = $region17
    $region16: #{tpu_custom_call.1} parent=1 // pred_region
      _
    $region17: #{tpu_custom_call.1} parent=1 // pred_fallthru
      _
    // Predicated region
    $region18: #{tpu_custom_call.1} parent=1 // pred_check
      _
    $region19: #{tpu_custom_call.1} parent=1 // pred_check_branch
      %20 = sbr.rel (0) target = $region21
    $region20: #{tpu_custom_call.1} parent=1 // pred_region
      _
    $region21: #{tpu_custom_call.1} parent=1 // pred_fallthru
      _
    %v21 = vld [vmem:[%s0] sm:$0xf]
    %v22 = vld [vmem:[%s1] sm:$0xff]
    %v23 = vld [vmem:[%s2] sm:$0x1]
    %v25 = vlaneseq
    %v26 = vshrl.u32 %v25, 7
    %v27 = vsub.s32 0, %v26
    %v28 = vrot.slane %v23, %v27
    %vm30 = vcmask 64512
    %v32 = vsel %vm30, %v21, 0
    %34 = vmatprep.subr.mxu0 0.0
    %35 = vmatpush1.msra.mxu0 %v22
    %36 = vmatprep.subr.mxu0 0.0
    %37 = vmatpush1.msra.mxu0 0.0
    %38 = vmatprep.subr.mxu0 0.0
    %39 = vmatpush1.msra.mxu0 0.0
    %40 = vmatprep.subr.mxu0 0.0
    %41 = vmatpush1.msra.mxu0 0.0
    %42 = vmatprep.subr.mxu0 0.0
    %43 = vmatpush1.msra.mxu0 0.0
    %44 = vmatprep.subr.mxu0 0.0
    %45 = vmatpush1.msra.mxu0 0.0
    %46 = vmatprep.subr.mxu0 0.0
    %47 = vmatpush1.msra.mxu0 0.0
    %48 = vmatprep.subr.mxu0 0.0
    %49 = vmatpush1.msra.mxu0 0.0
    %50 = vmatprep.subr.mxu0 0.0
    %51 = vmatpush1.msra.mxu0 0.0
    %52 = vmatprep.subr.mxu0 0.0
    %53 = vmatpush1.msra.mxu0 0.0
    %54 = vmatprep.subr.mxu0 0.0
    %55 = vmatpush1.msra.mxu0 0.0
    %56 = vmatprep.subr.mxu0 0.0
    %57 = vmatpush1.msra.mxu0 0.0
    %58 = vmatprep.subr.mxu0 0.0
    %59 = vmatpush1.msra.mxu0 0.0
    %60 = vmatprep.subr.mxu0 0.0
    %61 = vmatpush1.msra.mxu0 0.0
    %62 = vmatprep.subr.mxu0 0.0
    %63 = vmatpush1.msra.mxu0 0.0
    %64 = vmatprep.subr.mxu0 0.0
    %65 = vmatpush1.msra.mxu0 0.0
    %66 = vmatprep.subr.mxu0 0.0
    %67 = vmatpush1.msra.mxu0 0.0
    %68 = vmatprep.subr.mxu0 0.0
    %69 = vmatpush1.msra.mxu0 0.0
    %70 = vmatprep.subr.mxu0 0.0
    %71 = vmatpush1.msra.mxu0 0.0
    %72 = vmatprep.subr.mxu0 0.0
    %73 = vmatpush1.msra.mxu0 0.0
    %74 = vmatprep.subr.mxu0 0.0
    %75 = vmatpush1.msra.mxu0 0.0
    %76 = vmatprep.subr.mxu0 0.0
    %77 = vmatpush1.msra.mxu0 0.0
    %78 = vmatprep.subr.mxu0 0.0
    %79 = vmatpush1.msra.mxu0 0.0
    %80 = vmatprep.subr.mxu0 0.0
    %81 = vmatpush1.msra.mxu0 0.0
    %82 = vmatprep.subr.mxu0 0.0
    %83 = vmatpush1.msra.mxu0 0.0
    %84 = vmatprep.subr.mxu0 0.0
    %85 = vmatpush1.msra.mxu0 0.0
    %86 = vmatprep.subr.mxu0 0.0
    %87 = vmatpush1.msra.mxu0 0.0
    %88 = vmatprep.subr.mxu0 0.0
    %89 = vmatpush1.msra.mxu0 0.0
    %90 = vmatprep.subr.mxu0 0.0
    %91 = vmatpush1.msra.mxu0 0.0
    %92 = vmatprep.subr.mxu0 0.0
    %93 = vmatpush1.msra.mxu0 0.0
    %94 = vmatprep.subr.mxu0 0.0
    %95 = vmatpush1.msra.mxu0 0.0
    %96 = vmatprep.subr.mxu0 0.0
    %97 = vmatpush1.msra.mxu0 0.0
    %98 = vmatprep.mubr.f32.mxu0 0.0
    %99 = vmatmul.mubr.f32.gmra.mrb[0].mxu0 %v32
    %v100 = vpop.f32.mrb[0].mxu0
    %v101 = vadd.f32 %v28, %v100
    %v102 = vpop.f32.mrb[0].mxu0
    %103 = vdwg.mxu0
    %v104 = vmax.f32 %v101, 0.0
    %v105 = vld [vmem:[%s3] sm:$0xff]
    %v106 = vld [vmem:[%s3 + $0x8] sm:$0xff]
    %v107 = vld [vmem:[%s3 + $0x10] sm:$0xff]
    %v108 = vld [vmem:[%s3 + $0x18] sm:$0xff]
    %v109 = vld [vmem:[%s4] sm:$0x1]
    %v111 = vlaneseq
    %v112 = vshrl.u32 %v111, 7
    %v113 = vsub.s32 0, %v112
    %v114 = vrot.slane %v109, %v113
    %vm116 = vcmask 261120
    %v118 = vsel %vm116, %v104, 0
    %120 = vmatprep.subr.mxu0 0.0
    %121 = vmatpush1.msra.mxu0 %v105
    %122 = vmatprep.subr.mxu0 0.0
    %123 = vmatpush1.msra.mxu0 %v106
    %124 = vmatprep.subr.mxu0 0.0
    %125 = vmatpush1.msra.mxu0 %v107
    %126 = vmatprep.subr.mxu0 0.0
    %127 = vmatpush1.msra.mxu0 %v108
    %128 = vmatprep.subr.mxu0 0.0
    %129 = vmatpush1.msra.mxu0 0.0
    %130 = vmatprep.subr.mxu0 0.0
    %131 = vmatpush1.msra.mxu0 0.0
    %132 = vmatprep.subr.mxu0 0.0
    %133 = vmatpush1.msra.mxu0 0.0
    %134 = vmatprep.subr.mxu0 0.0
    %135 = vmatpush1.msra.mxu0 0.0
    %136 = vmatprep.subr.mxu0 0.0
    %137 = vmatpush1.msra.mxu0 0.0
    %138 = vmatprep.subr.mxu0 0.0
    %139 = vmatpush1.msra.mxu0 0.0
    %140 = vmatprep.subr.mxu0 0.0
    %141 = vmatpush1.msra.mxu0 0.0
    %142 = vmatprep.subr.mxu0 0.0
    %143 = vmatpush1.msra.mxu0 0.0
    %144 = vmatprep.subr.mxu0 0.0
    %145 = vmatpush1.msra.mxu0 0.0
    %146 = vmatprep.subr.mxu0 0.0
    %147 = vmatpush1.msra.mxu0 0.0
    %148 = vmatprep.subr.mxu0 0.0
    %149 = vmatpush1.msra.mxu0 0.0
    %150 = vmatprep.subr.mxu0 0.0
    %151 = vmatpush1.msra.mxu0 0.0
    %152 = vmatprep.subr.mxu0 0.0
    %153 = vmatpush1.msra.mxu0 0.0
    %154 = vmatprep.subr.mxu0 0.0
    %155 = vmatpush1.msra.mxu0 0.0
    %156 = vmatprep.subr.mxu0 0.0
    %157 = vmatpush1.msra.mxu0 0.0
    %158 = vmatprep.subr.mxu0 0.0
    %159 = vmatpush1.msra.mxu0 0.0
    %160 = vmatprep.subr.mxu0 0.0
    %161 = vmatpush1.msra.mxu0 0.0
    %162 = vmatprep.subr.mxu0 0.0
    %163 = vmatpush1.msra.mxu0 0.0
    %164 = vmatprep.subr.mxu0 0.0
    %165 = vmatpush1.msra.mxu0 0.0
    %166 = vmatprep.subr.mxu0 0.0
    %167 = vmatpush1.msra.mxu0 0.0
    %168 = vmatprep.subr.mxu0 0.0
    %169 = vmatpush1.msra.mxu0 0.0
    %170 = vmatprep.subr.mxu0 0.0
    %171 = vmatpush1.msra.mxu0 0.0
    %172 = vmatprep.subr.mxu0 0.0
    %173 = vmatpush1.msra.mxu0 0.0
    %174 = vmatprep.subr.mxu0 0.0
    %175 = vmatpush1.msra.mxu0 0.0
    %176 = vmatprep.subr.mxu0 0.0
    %177 = vmatpush1.msra.mxu0 0.0
    %178 = vmatprep.subr.mxu0 0.0
    %179 = vmatpush1.msra.mxu0 0.0
    %180 = vmatprep.subr.mxu0 0.0
    %181 = vmatpush1.msra.mxu0 0.0
    %182 = vmatprep.subr.mxu0 0.0
    %183 = vmatpush1.msra.mxu0 0.0
    %184 = vmatprep.mubr.f32.mxu0 0.0
    %185 = vmatmul.mubr.f32.gmra.mrb[0].mxu0 %v118
    %v186 = vpop.f32.mrb[0].mxu0
    %v187 = vadd.f32 %v114, %v186
    %v188 = vpop.f32.mrb[0].mxu0
    %189 = vdwg.mxu0
    %vm190 = vcmask 125952
    %191 = vst.msk [vmem:[#allocation2] sm:$0xf] %vm190, %v187
    // Predicated region
    $region22: #{tpu_custom_call.1} parent=1 // pred_check
      _
    $region23: #{tpu_custom_call.1} parent=1 // pred_check_branch
      %193 = sbr.rel (0) target = $region25
    $region24: #{tpu_custom_call.1} parent=1 // pred_region
      %s195 = ssub.s32 64, 64
      %196 = vsyncadd [#allocation3], %s195
      %s198 = sshll.u32 [#allocation2], 4
      %s199 = int_to_ptr.vmem [resolvable:$true] %s198
      %201 = dma.vmem_to_hbm [thread:$0]  %s199, 64, %s5, [#allocation3]
    $region25: #{tpu_custom_call.1} parent=1 // pred_fallthru
      _
    // Predicated region
    $region26: #{tpu_custom_call.1} parent=1 // pred_check
      _
    $region27: #{tpu_custom_call.1} parent=1 // pred_check_branch
      %203 = sbr.rel (0) target = $region29
    $region28: #{tpu_custom_call.1} parent=1 // pred_region
      %204 = dma.done [#allocation3], 64
    $region29: #{tpu_custom_call.1} parent=1 // pred_fallthru
      _
    %205 = vsyncpa [#allocation3], 1

</llo_original>
